<compile_context>
chip_gen: v6e
topology: v6e:2x2x1
jax: 0.10.0
libtpu: 0.0.40
codegen_flags: <defaults>
</compile_context>

<pallas_src>
import jax
import jax.numpy as jnp
import numpy as np
from jax.experimental import pallas as pl
from jax.experimental.pallas import tpu as pltpu

_SUB = 8
_LANES = 128
_CHUNK = _SUB * _LANES  # 1024 vocab entries compared per inner-loop step
_TT = 8                 # tokens per grid step (along the grid, not the vreg)


def _make_lookup_kernel(n_chunks: int, vocab_size: int, vocab_pad: int, unk_idx: int):
    # All closed-over values are Python ints (become literals in the jaxpr);
    # no jnp arrays are captured (that caused the previous tracing failure).
    def kernel(tok_ref, vocab_ref, out_ref):
        # tok_ref  : (_TT, 1) int32 token codes in SMEM (cheap scalar reads)
        # vocab_ref: (n_chunks, 8, 128) int32 vocab codes, resident in VMEM
        # out_ref  : (_TT, 1, 1) int32 vocab indices
        toks = [tok_ref[t, 0] for t in range(_TT)]  # hoist SMEM scalar reads

        def body(c, accs):
            chunk = vocab_ref[c]      # (8, 128); dynamic index on leading dim
            slot = c + 1              # 0 means "no match yet"
            # Per token: 1 scalar-broadcast compare + 1 select on the VPU,
            # covering 1024 vocab entries per iteration.
            return tuple(
                jnp.where(chunk == toks[t], slot, accs[t]) for t in range(_TT)
            )

        init = tuple(jnp.zeros((_SUB, _LANES), jnp.int32) for _ in range(_TT))
        accs = jax.lax.fori_loop(
            0, n_chunks, body, init, unroll=max(1, min(4, n_chunks))
        )

        # Epilogue (once per tile): decode (chunk, sublane, lane) -> global
        # vocab index, min-reduce over the chunk, clamp padding/miss to unk.
        within = (
            jax.lax.broadcasted_iota(jnp.int32, (_SUB, _LANES), 0) * _LANES
            + jax.lax.broadcasted_iota(jnp.int32, (_SUB, _LANES), 1)
        )
        for t in range(_TT):
            cand = jnp.where(
                accs[t] > 0, (accs[t] - 1) * _CHUNK + within, vocab_pad
            )
            best = jnp.min(jnp.min(cand, axis=1, keepdims=True), axis=0, keepdims=True)
            out_ref[t] = jnp.where(best >= vocab_size, unk_idx, best)

    return kernel


def vocab_transform(token_codes, start_ids, end_ids, vocab_codes, unk_idx):
    """Pallas implementation of VocabTransform.forward.

    token_codes: (T,) int32 hashed token codes
    start_ids:   (T,) int32
    end_ids:     (T,) int32
    vocab_codes: (V,) int32 hashed vocab entry codes (assumed unique)
    """
    token_codes = jnp.asarray(token_codes, dtype=jnp.int32)
    vocab_codes = jnp.asarray(vocab_codes, dtype=jnp.int32)
    T = int(token_codes.shape[0])
    V = int(vocab_codes.shape[0])

    # Token blocks of _TT along the grid.
    n_blocks = max(1, pl.cdiv(T, _TT))
    T_pad = n_blocks * _TT
    toks_col = jnp.zeros((T_pad, 1), jnp.int32).at[:T, 0].set(token_codes)

    # Vocab padded to whole (8,128) chunks.  Zero padding is safe: padded
    # entries decode to indices >= V, which the epilogue clamps to unk_idx,
    # and any real match (< V) wins the min.
    n_chunks = max(1, pl.cdiv(V, _CHUNK))
    V_pad = n_chunks * _CHUNK
    vocab3d = (
        jnp.zeros((V_pad,), jnp.int32).at[:V].set(vocab_codes)
        .reshape(n_chunks, _SUB, _LANES)
    )

    out3d = pl.pallas_call(
        _make_lookup_kernel(n_chunks, V, V_pad, int(unk_idx)),
        out_shape=jax.ShapeDtypeStruct((T_pad, 1, 1), jnp.int32),
        grid=(n_blocks,),
        in_specs=[
            pl.BlockSpec((_TT, 1), lambda i: (i, 0),
                         memory_space=pltpu.MemorySpace.SMEM),
            pl.BlockSpec((n_chunks, _SUB, _LANES), lambda i: (0, 0, 0)),
        ],
        out_specs=pl.BlockSpec((_TT, 1, 1), lambda i: (i, 0, 0)),
        compiler_params=pltpu.CompilerParams(
            dimension_semantics=("parallel",),
        ),
        cost_estimate=pl.CostEstimate(
            flops=2 * T_pad * V_pad,
            transcendentals=0,
            bytes_accessed=4 * (T_pad + V_pad + T_pad),
        ),
    )(toks_col, vocab3d)

    token_ids = out3d.reshape(T_pad)[:T]
    return {
        "token_ids": token_ids,
        "start_ids": jnp.asarray(start_ids, dtype=jnp.int32),
        "end_ids": jnp.asarray(end_ids, dtype=jnp.int32),
    }


if __name__ == "__main__":
    key = jax.random.PRNGKey(0)

    V = 32       # vocabulary size
    T = 8        # number of tokens in the input sequence
    UNK_IDX = 0  # ScriptVocabulary unk index

    # Deterministic "hashed" vocabulary codes (distinct positive int32s),
    # built in numpy int64 to avoid int32 overflow in the multiply.
    vocab_codes_np = ((np.arange(V, dtype=np.int64) * 2654435761) % 100003 + 1).astype(
        np.int32
    )
    vocab_codes = jnp.asarray(vocab_codes_np)

    # Tokens: mix of in-vocab codes and out-of-vocab codes (to hit unk path).
    sel = jax.random.randint(key, (T,), 0, V)
    token_codes = vocab_codes[sel]
    token_codes = token_codes.at[2].set(jnp.int32(999999))
    token_codes = token_codes.at[5].set(jnp.int32(888888))

    start_ids = jnp.arange(T, dtype=jnp.int32) * 4
    end_ids = start_ids + 3

    out = vocab_transform(token_codes, start_ids, end_ids, vocab_codes, UNK_IDX)
    out = jax.tree_util.tree_map(jax.block_until_ready, out)

    # Reference check in plain numpy.
    vc = np.asarray(vocab_codes)
    tc = np.asarray(token_codes)
    ref = np.array(
        [np.where(vc == t)[0][0] if (vc == t).any() else UNK_IDX for t in tc],
        dtype=np.int32,
    )
    assert np.array_equal(np.asarray(out["token_ids"]), ref), (out["token_ids"], ref)
    assert np.array_equal(np.asarray(out["start_ids"]), np.asarray(start_ids))
    assert np.array_equal(np.asarray(out["end_ids"]), np.asarray(end_ids))

    print("KERNEL_OK")
</pallas_src>

<mosaic_0001>
module attributes {stable_mosaic.version = 11 : i64} {
  func.func @kernel(%arg0: i32, %arg1: memref<8x1xi32, #tpu.memory_space<smem>>, %arg2: memref<1x8x128xi32, #tpu.memory_space<vmem>>, %arg3: memref<8x1x1xi32, #tpu.memory_space<vmem>>) attributes {dimension_semantics = [#tpu.dimension_semantics<parallel>], iteration_bounds = array<i64: 1>, scalar_prefetch = 0 : i64, scratch_operands = 0 : i64, tpu.core_type = #tpu.core_type<tc>, window_params = [{transform_indices = @transform_0, window_bounds = array<i64: 8, 1>}, {pipeline_mode = #tpu.pipeline_mode<synchronous>, transform_indices = @transform_1, window_bounds = array<i64: 1, 8, 128>}, {transform_indices = @transform_2, window_bounds = array<i64: 8, 1, 1>}]} {
    %c0 = arith.constant 0 : index
    %c0_0 = arith.constant 0 : index
    %0 = memref.load %arg1[%c0, %c0_0] : memref<8x1xi32, #tpu.memory_space<smem>>
    %c1 = arith.constant 1 : index
    %c0_1 = arith.constant 0 : index
    %1 = memref.load %arg1[%c1, %c0_1] : memref<8x1xi32, #tpu.memory_space<smem>>
    %c2 = arith.constant 2 : index
    %c0_2 = arith.constant 0 : index
    %2 = memref.load %arg1[%c2, %c0_2] : memref<8x1xi32, #tpu.memory_space<smem>>
    %c3 = arith.constant 3 : index
    %c0_3 = arith.constant 0 : index
    %3 = memref.load %arg1[%c3, %c0_3] : memref<8x1xi32, #tpu.memory_space<smem>>
    %c4 = arith.constant 4 : index
    %c0_4 = arith.constant 0 : index
    %4 = memref.load %arg1[%c4, %c0_4] : memref<8x1xi32, #tpu.memory_space<smem>>
    %c5 = arith.constant 5 : index
    %c0_5 = arith.constant 0 : index
    %5 = memref.load %arg1[%c5, %c0_5] : memref<8x1xi32, #tpu.memory_space<smem>>
    %c6 = arith.constant 6 : index
    %c0_6 = arith.constant 0 : index
    %6 = memref.load %arg1[%c6, %c0_6] : memref<8x1xi32, #tpu.memory_space<smem>>
    %c7 = arith.constant 7 : index
    %c0_7 = arith.constant 0 : index
    %7 = memref.load %arg1[%c7, %c0_7] : memref<8x1xi32, #tpu.memory_space<smem>>
    %c0_i32 = arith.constant 0 : i32
    %8 = vector.broadcast %c0_i32 : i32 to vector<8x128xi32>
    %c0_i32_8 = arith.constant 0 : i32
    %9 = vector.broadcast %c0_i32_8 : i32 to vector<8x128xi32>
    %c0_i32_9 = arith.constant 0 : i32
    %10 = vector.broadcast %c0_i32_9 : i32 to vector<8x128xi32>
    %c0_i32_10 = arith.constant 0 : i32
    %11 = vector.broadcast %c0_i32_10 : i32 to vector<8x128xi32>
    %c0_i32_11 = arith.constant 0 : i32
    %12 = vector.broadcast %c0_i32_11 : i32 to vector<8x128xi32>
    %c0_i32_12 = arith.constant 0 : i32
    %13 = vector.broadcast %c0_i32_12 : i32 to vector<8x128xi32>
    %c0_i32_13 = arith.constant 0 : i32
    %14 = vector.broadcast %c0_i32_13 : i32 to vector<8x128xi32>
    %c0_i32_14 = arith.constant 0 : i32
    %15 = vector.broadcast %c0_i32_14 : i32 to vector<8x128xi32>
    %c0_i32_15 = arith.constant 0 : i32
    %16 = arith.index_cast %c0_i32_15 : i32 to index
    %c0_16 = arith.constant 0 : index
    %c0_17 = arith.constant 0 : index
    %17 = vector.load %arg2[%16, %c0_16, %c0_17] : memref<1x8x128xi32, #tpu.memory_space<vmem>>, vector<1x8x128xi32>
    %18 = vector.shape_cast %17 : vector<1x8x128xi32> to vector<8x128xi32>
    %c1_i32 = arith.constant 1 : i32
    %19 = arith.addi %c0_i32_15, %c1_i32 : i32
    %20 = vector.broadcast %0 : i32 to vector<8x128xi32>
    %21 = arith.cmpi eq, %18, %20 : vector<8x128xi32>
    %22 = vector.broadcast %19 : i32 to vector<8x128xi32>
    %23 = arith.select %21, %22, %8 : vector<8x128xi1>, vector<8x128xi32>
    %24 = vector.broadcast %1 : i32 to vector<8x128xi32>
    %25 = arith.cmpi eq, %18, %24 : vector<8x128xi32>
    %26 = vector.broadcast %19 : i32 to vector<8x128xi32>
    %27 = arith.select %25, %26, %9 : vector<8x128xi1>, vector<8x128xi32>
    %28 = vector.broadcast %2 : i32 to vector<8x128xi32>
    %29 = arith.cmpi eq, %18, %28 : vector<8x128xi32>
    %30 = vector.broadcast %19 : i32 to vector<8x128xi32>
    %31 = arith.select %29, %30, %10 : vector<8x128xi1>, vector<8x128xi32>
    %32 = vector.broadcast %3 : i32 to vector<8x128xi32>
    %33 = arith.cmpi eq, %18, %32 : vector<8x128xi32>
    %34 = vector.broadcast %19 : i32 to vector<8x128xi32>
    %35 = arith.select %33, %34, %11 : vector<8x128xi1>, vector<8x128xi32>
    %36 = vector.broadcast %4 : i32 to vector<8x128xi32>
    %37 = arith.cmpi eq, %18, %36 : vector<8x128xi32>
    %38 = vector.broadcast %19 : i32 to vector<8x128xi32>
    %39 = arith.select %37, %38, %12 : vector<8x128xi1>, vector<8x128xi32>
    %40 = vector.broadcast %5 : i32 to vector<8x128xi32>
    %41 = arith.cmpi eq, %18, %40 : vector<8x128xi32>
    %42 = vector.broadcast %19 : i32 to vector<8x128xi32>
    %43 = arith.select %41, %42, %13 : vector<8x128xi1>, vector<8x128xi32>
    %44 = vector.broadcast %6 : i32 to vector<8x128xi32>
    %45 = arith.cmpi eq, %18, %44 : vector<8x128xi32>
    %46 = vector.broadcast %19 : i32 to vector<8x128xi32>
    %47 = arith.select %45, %46, %14 : vector<8x128xi1>, vector<8x128xi32>
    %48 = vector.broadcast %7 : i32 to vector<8x128xi32>
    %49 = arith.cmpi eq, %18, %48 : vector<8x128xi32>
    %50 = vector.broadcast %19 : i32 to vector<8x128xi32>
    %51 = arith.select %49, %50, %15 : vector<8x128xi1>, vector<8x128xi32>
    %c1_i32_18 = arith.constant 1 : i32
    %52 = tpu.iota {dimensions = array<i32: 0>} : vector<8x128xi32>
    %c128_i32 = arith.constant 128 : i32
    %53 = vector.broadcast %c128_i32 : i32 to vector<8x128xi32>
    %54 = arith.muli %52, %53 : vector<8x128xi32>
    %55 = tpu.iota {dimensions = array<i32: 1>} : vector<8x128xi32>
    %56 = arith.addi %54, %55 : vector<8x128xi32>
    %c0_i32_19 = arith.constant 0 : i32
    %57 = vector.broadcast %c0_i32_19 : i32 to vector<8x128xi32>
    %58 = arith.cmpi sgt, %23, %57 : vector<8x128xi32>
    %c1_i32_20 = arith.constant 1 : i32
    %59 = vector.broadcast %c1_i32_20 : i32 to vector<8x128xi32>
    %60 = arith.subi %23, %59 : vector<8x128xi32>
    %c1024_i32 = arith.constant 1024 : i32
    %61 = vector.broadcast %c1024_i32 : i32 to vector<8x128xi32>
    %62 = arith.muli %60, %61 : vector<8x128xi32>
    %63 = arith.addi %62, %56 : vector<8x128xi32>
    %c1024_i32_21 = arith.constant 1024 : i32
    %64 = vector.broadcast %c1024_i32_21 : i32 to vector<8x128xi32>
    %65 = arith.select %58, %63, %64 : vector<8x128xi1>, vector<8x128xi32>
    %cst = arith.constant dense<2147483647> : vector<8xi32>
    %66 = vector.multi_reduction <minsi>, %65, %cst [1] : vector<8x128xi32> to vector<8xi32>
    %67 = vector.shape_cast %66 : vector<8xi32> to vector<8x1xi32>
    %cst_22 = arith.constant dense<2147483647> : vector<1xi32>
    %68 = vector.multi_reduction <minsi>, %67, %cst_22 [0] : vector<8x1xi32> to vector<1xi32>
    %69 = vector.shape_cast %68 : vector<1xi32> to vector<1x1xi32>
    %c32_i32 = arith.constant 32 : i32
    %70 = vector.broadcast %c32_i32 : i32 to vector<1x1xi32>
    %71 = arith.cmpi sge, %69, %70 : vector<1x1xi32>
    %c0_i32_23 = arith.constant 0 : i32
    %72 = vector.broadcast %c0_i32_23 : i32 to vector<1x1xi32>
    %73 = arith.select %71, %72, %69 : vector<1x1xi1>, vector<1x1xi32>
    %c0_24 = arith.constant 0 : index
    %c0_25 = arith.constant 0 : index
    %c0_26 = arith.constant 0 : index
    %74 = vector.load %arg3[%c0_24, %c0_25, %c0_26] : memref<8x1x1xi32, #tpu.memory_space<vmem>>, vector<1x1x1xi32>
    %75 = vector.shape_cast %74 : vector<1x1x1xi32> to vector<1x1xi32>
    %76 = vector.shape_cast %73 : vector<1x1xi32> to vector<1x1x1xi32>
    tpu.vector_store %arg3[%c0_24, %c0_25, %c0_26], %76 {strides = array<i32>} : memref<8x1x1xi32, #tpu.memory_space<vmem>>, vector<1x1x1xi32>,
    %c0_i32_27 = arith.constant 0 : i32
    %77 = vector.broadcast %c0_i32_27 : i32 to vector<8x128xi32>
    %78 = arith.cmpi sgt, %27, %77 : vector<8x128xi32>
    %c1_i32_28 = arith.constant 1 : i32
    %79 = vector.broadcast %c1_i32_28 : i32 to vector<8x128xi32>
    %80 = arith.subi %27, %79 : vector<8x128xi32>
    %c1024_i32_29 = arith.constant 1024 : i32
    %81 = vector.broadcast %c1024_i32_29 : i32 to vector<8x128xi32>
    %82 = arith.muli %80, %81 : vector<8x128xi32>
    %83 = arith.addi %82, %56 : vector<8x128xi32>
    %c1024_i32_30 = arith.constant 1024 : i32
    %84 = vector.broadcast %c1024_i32_30 : i32 to vector<8x128xi32>
    %85 = arith.select %78, %83, %84 : vector<8x128xi1>, vector<8x128xi32>
    %cst_31 = arith.constant dense<2147483647> : vector<8xi32>
    %86 = vector.multi_reduction <minsi>, %85, %cst_31 [1] : vector<8x128xi32> to vector<8xi32>
    %87 = vector.shape_cast %86 : vector<8xi32> to vector<8x1xi32>
    %cst_32 = arith.constant dense<2147483647> : vector<1xi32>
    %88 = vector.multi_reduction <minsi>, %87, %cst_32 [0] : vector<8x1xi32> to vector<1xi32>
    %89 = vector.shape_cast %88 : vector<1xi32> to vector<1x1xi32>
    %c32_i32_33 = arith.constant 32 : i32
    %90 = vector.broadcast %c32_i32_33 : i32 to vector<1x1xi32>
    %91 = arith.cmpi sge, %89, %90 : vector<1x1xi32>
    %c0_i32_34 = arith.constant 0 : i32
    %92 = vector.broadcast %c0_i32_34 : i32 to vector<1x1xi32>
    %93 = arith.select %91, %92, %89 : vector<1x1xi1>, vector<1x1xi32>
    %c1_35 = arith.constant 1 : index
    %c0_36 = arith.constant 0 : index
    %c0_37 = arith.constant 0 : index
    %94 = vector.load %arg3[%c1_35, %c0_36, %c0_37] : memref<8x1x1xi32, #tpu.memory_space<vmem>>, vector<1x1x1xi32>
    %95 = vector.shape_cast %94 : vector<1x1x1xi32> to vector<1x1xi32>
    %96 = vector.shape_cast %93 : vector<1x1xi32> to vector<1x1x1xi32>
    tpu.vector_store %arg3[%c1_35, %c0_36, %c0_37], %96 {strides = array<i32>} : memref<8x1x1xi32, #tpu.memory_space<vmem>>, vector<1x1x1xi32>,
    %c0_i32_38 = arith.constant 0 : i32
    %97 = vector.broadcast %c0_i32_38 : i32 to vector<8x128xi32>
    %98 = arith.cmpi sgt, %31, %97 : vector<8x128xi32>
    %c1_i32_39 = arith.constant 1 : i32
    %99 = vector.broadcast %c1_i32_39 : i32 to vector<8x128xi32>
    %100 = arith.subi %31, %99 : vector<8x128xi32>
    %c1024_i32_40 = arith.constant 1024 : i32
    %101 = vector.broadcast %c1024_i32_40 : i32 to vector<8x128xi32>
    %102 = arith.muli %100, %101 : vector<8x128xi32>
    %103 = arith.addi %102, %56 : vector<8x128xi32>
    %c1024_i32_41 = arith.constant 1024 : i32
    %104 = vector.broadcast %c1024_i32_41 : i32 to vector<8x128xi32>
    %105 = arith.select %98, %103, %104 : vector<8x128xi1>, vector<8x128xi32>
    %cst_42 = arith.constant dense<2147483647> : vector<8xi32>
    %106 = vector.multi_reduction <minsi>, %105, %cst_42 [1] : vector<8x128xi32> to vector<8xi32>
    %107 = vector.shape_cast %106 : vector<8xi32> to vector<8x1xi32>
    %cst_43 = arith.constant dense<2147483647> : vector<1xi32>
    %108 = vector.multi_reduction <minsi>, %107, %cst_43 [0] : vector<8x1xi32> to vector<1xi32>
    %109 = vector.shape_cast %108 : vector<1xi32> to vector<1x1xi32>
    %c32_i32_44 = arith.constant 32 : i32
    %110 = vector.broadcast %c32_i32_44 : i32 to vector<1x1xi32>
    %111 = arith.cmpi sge, %109, %110 : vector<1x1xi32>
    %c0_i32_45 = arith.constant 0 : i32
    %112 = vector.broadcast %c0_i32_45 : i32 to vector<1x1xi32>
    %113 = arith.select %111, %112, %109 : vector<1x1xi1>, vector<1x1xi32>
    %c2_46 = arith.constant 2 : index
    %c0_47 = arith.constant 0 : index
    %c0_48 = arith.constant 0 : index
    %114 = vector.load %arg3[%c2_46, %c0_47, %c0_48] : memref<8x1x1xi32, #tpu.memory_space<vmem>>, vector<1x1x1xi32>
    %115 = vector.shape_cast %114 : vector<1x1x1xi32> to vector<1x1xi32>
    %116 = vector.shape_cast %113 : vector<1x1xi32> to vector<1x1x1xi32>
    tpu.vector_store %arg3[%c2_46, %c0_47, %c0_48], %116 {strides = array<i32>} : memref<8x1x1xi32, #tpu.memory_space<vmem>>, vector<1x1x1xi32>,
    %c0_i32_49 = arith.constant 0 : i32
    %117 = vector.broadcast %c0_i32_49 : i32 to vector<8x128xi32>
    %118 = arith.cmpi sgt, %35, %117 : vector<8x128xi32>
    %c1_i32_50 = arith.constant 1 : i32
    %119 = vector.broadcast %c1_i32_50 : i32 to vector<8x128xi32>
    %120 = arith.subi %35, %119 : vector<8x128xi32>
    %c1024_i32_51 = arith.constant 1024 : i32
    %121 = vector.broadcast %c1024_i32_51 : i32 to vector<8x128xi32>
    %122 = arith.muli %120, %121 : vector<8x128xi32>
    %123 = arith.addi %122, %56 : vector<8x128xi32>
    %c1024_i32_52 = arith.constant 1024 : i32
    %124 = vector.broadcast %c1024_i32_52 : i32 to vector<8x128xi32>
    %125 = arith.select %118, %123, %124 : vector<8x128xi1>, vector<8x128xi32>
    %cst_53 = arith.constant dense<2147483647> : vector<8xi32>
    %126 = vector.multi_reduction <minsi>, %125, %cst_53 [1] : vector<8x128xi32> to vector<8xi32>
    %127 = vector.shape_cast %126 : vector<8xi32> to vector<8x1xi32>
    %cst_54 = arith.constant dense<2147483647> : vector<1xi32>
    %128 = vector.multi_reduction <minsi>, %127, %cst_54 [0] : vector<8x1xi32> to vector<1xi32>
    %129 = vector.shape_cast %128 : vector<1xi32> to vector<1x1xi32>
    %c32_i32_55 = arith.constant 32 : i32
    %130 = vector.broadcast %c32_i32_55 : i32 to vector<1x1xi32>
    %131 = arith.cmpi sge, %129, %130 : vector<1x1xi32>
    %c0_i32_56 = arith.constant 0 : i32
    %132 = vector.broadcast %c0_i32_56 : i32 to vector<1x1xi32>
    %133 = arith.select %131, %132, %129 : vector<1x1xi1>, vector<1x1xi32>
    %c3_57 = arith.constant 3 : index
    %c0_58 = arith.constant 0 : index
    %c0_59 = arith.constant 0 : index
    %134 = vector.load %arg3[%c3_57, %c0_58, %c0_59] : memref<8x1x1xi32, #tpu.memory_space<vmem>>, vector<1x1x1xi32>
    %135 = vector.shape_cast %134 : vector<1x1x1xi32> to vector<1x1xi32>
    %136 = vector.shape_cast %133 : vector<1x1xi32> to vector<1x1x1xi32>
    tpu.vector_store %arg3[%c3_57, %c0_58, %c0_59], %136 {strides = array<i32>} : memref<8x1x1xi32, #tpu.memory_space<vmem>>, vector<1x1x1xi32>,
    %c0_i32_60 = arith.constant 0 : i32
    %137 = vector.broadcast %c0_i32_60 : i32 to vector<8x128xi32>
    %138 = arith.cmpi sgt, %39, %137 : vector<8x128xi32>
    %c1_i32_61 = arith.constant 1 : i32
    %139 = vector.broadcast %c1_i32_61 : i32 to vector<8x128xi32>
    %140 = arith.subi %39, %139 : vector<8x128xi32>
    %c1024_i32_62 = arith.constant 1024 : i32
    %141 = vector.broadcast %c1024_i32_62 : i32 to vector<8x128xi32>
    %142 = arith.muli %140, %141 : vector<8x128xi32>
    %143 = arith.addi %142, %56 : vector<8x128xi32>
    %c1024_i32_63 = arith.constant 1024 : i32
    %144 = vector.broadcast %c1024_i32_63 : i32 to vector<8x128xi32>
    %145 = arith.select %138, %143, %144 : vector<8x128xi1>, vector<8x128xi32>
    %cst_64 = arith.constant dense<2147483647> : vector<8xi32>
    %146 = vector.multi_reduction <minsi>, %145, %cst_64 [1] : vector<8x128xi32> to vector<8xi32>
    %147 = vector.shape_cast %146 : vector<8xi32> to vector<8x1xi32>
    %cst_65 = arith.constant dense<2147483647> : vector<1xi32>
    %148 = vector.multi_reduction <minsi>, %147, %cst_65 [0] : vector<8x1xi32> to vector<1xi32>
    %149 = vector.shape_cast %148 : vector<1xi32> to vector<1x1xi32>
    %c32_i32_66 = arith.constant 32 : i32
    %150 = vector.broadcast %c32_i32_66 : i32 to vector<1x1xi32>
    %151 = arith.cmpi sge, %149, %150 : vector<1x1xi32>
    %c0_i32_67 = arith.constant 0 : i32
    %152 = vector.broadcast %c0_i32_67 : i32 to vector<1x1xi32>
    %153 = arith.select %151, %152, %149 : vector<1x1xi1>, vector<1x1xi32>
    %c4_68 = arith.constant 4 : index
    %c0_69 = arith.constant 0 : index
    %c0_70 = arith.constant 0 : index
    %154 = vector.load %arg3[%c4_68, %c0_69, %c0_70] : memref<8x1x1xi32, #tpu.memory_space<vmem>>, vector<1x1x1xi32>
    %155 = vector.shape_cast %154 : vector<1x1x1xi32> to vector<1x1xi32>
    %156 = vector.shape_cast %153 : vector<1x1xi32> to vector<1x1x1xi32>
    tpu.vector_store %arg3[%c4_68, %c0_69, %c0_70], %156 {strides = array<i32>} : memref<8x1x1xi32, #tpu.memory_space<vmem>>, vector<1x1x1xi32>,
    %c0_i32_71 = arith.constant 0 : i32
    %157 = vector.broadcast %c0_i32_71 : i32 to vector<8x128xi32>
    %158 = arith.cmpi sgt, %43, %157 : vector<8x128xi32>
    %c1_i32_72 = arith.constant 1 : i32
    %159 = vector.broadcast %c1_i32_72 : i32 to vector<8x128xi32>
    %160 = arith.subi %43, %159 : vector<8x128xi32>
    %c1024_i32_73 = arith.constant 1024 : i32
    %161 = vector.broadcast %c1024_i32_73 : i32 to vector<8x128xi32>
    %162 = arith.muli %160, %161 : vector<8x128xi32>
    %163 = arith.addi %162, %56 : vector<8x128xi32>
    %c1024_i32_74 = arith.constant 1024 : i32
    %164 = vector.broadcast %c1024_i32_74 : i32 to vector<8x128xi32>
    %165 = arith.select %158, %163, %164 : vector<8x128xi1>, vector<8x128xi32>
    %cst_75 = arith.constant dense<2147483647> : vector<8xi32>
    %166 = vector.multi_reduction <minsi>, %165, %cst_75 [1] : vector<8x128xi32> to vector<8xi32>
    %167 = vector.shape_cast %166 : vector<8xi32> to vector<8x1xi32>
    %cst_76 = arith.constant dense<2147483647> : vector<1xi32>
    %168 = vector.multi_reduction <minsi>, %167, %cst_76 [0] : vector<8x1xi32> to vector<1xi32>
    %169 = vector.shape_cast %168 : vector<1xi32> to vector<1x1xi32>
    %c32_i32_77 = arith.constant 32 : i32
    %170 = vector.broadcast %c32_i32_77 : i32 to vector<1x1xi32>
    %171 = arith.cmpi sge, %169, %170 : vector<1x1xi32>
    %c0_i32_78 = arith.constant 0 : i32
    %172 = vector.broadcast %c0_i32_78 : i32 to vector<1x1xi32>
    %173 = arith.select %171, %172, %169 : vector<1x1xi1>, vector<1x1xi32>
    %c5_79 = arith.constant 5 : index
    %c0_80 = arith.constant 0 : index
    %c0_81 = arith.constant 0 : index
    %174 = vector.load %arg3[%c5_79, %c0_80, %c0_81] : memref<8x1x1xi32, #tpu.memory_space<vmem>>, vector<1x1x1xi32>
    %175 = vector.shape_cast %174 : vector<1x1x1xi32> to vector<1x1xi32>
    %176 = vector.shape_cast %173 : vector<1x1xi32> to vector<1x1x1xi32>
    tpu.vector_store %arg3[%c5_79, %c0_80, %c0_81], %176 {strides = array<i32>} : memref<8x1x1xi32, #tpu.memory_space<vmem>>, vector<1x1x1xi32>,
    %c0_i32_82 = arith.constant 0 : i32
    %177 = vector.broadcast %c0_i32_82 : i32 to vector<8x128xi32>
    %178 = arith.cmpi sgt, %47, %177 : vector<8x128xi32>
    %c1_i32_83 = arith.constant 1 : i32
    %179 = vector.broadcast %c1_i32_83 : i32 to vector<8x128xi32>
    %180 = arith.subi %47, %179 : vector<8x128xi32>
    %c1024_i32_84 = arith.constant 1024 : i32
    %181 = vector.broadcast %c1024_i32_84 : i32 to vector<8x128xi32>
    %182 = arith.muli %180, %181 : vector<8x128xi32>
    %183 = arith.addi %182, %56 : vector<8x128xi32>
    %c1024_i32_85 = arith.constant 1024 : i32
    %184 = vector.broadcast %c1024_i32_85 : i32 to vector<8x128xi32>
    %185 = arith.select %178, %183, %184 : vector<8x128xi1>, vector<8x128xi32>
    %cst_86 = arith.constant dense<2147483647> : vector<8xi32>
    %186 = vector.multi_reduction <minsi>, %185, %cst_86 [1] : vector<8x128xi32> to vector<8xi32>
    %187 = vector.shape_cast %186 : vector<8xi32> to vector<8x1xi32>
    %cst_87 = arith.constant dense<2147483647> : vector<1xi32>
    %188 = vector.multi_reduction <minsi>, %187, %cst_87 [0] : vector<8x1xi32> to vector<1xi32>
    %189 = vector.shape_cast %188 : vector<1xi32> to vector<1x1xi32>
    %c32_i32_88 = arith.constant 32 : i32
    %190 = vector.broadcast %c32_i32_88 : i32 to vector<1x1xi32>
    %191 = arith.cmpi sge, %189, %190 : vector<1x1xi32>
    %c0_i32_89 = arith.constant 0 : i32
    %192 = vector.broadcast %c0_i32_89 : i32 to vector<1x1xi32>
    %193 = arith.select %191, %192, %189 : vector<1x1xi1>, vector<1x1xi32>
    %c6_90 = arith.constant 6 : index
    %c0_91 = arith.constant 0 : index
    %c0_92 = arith.constant 0 : index
    %194 = vector.load %arg3[%c6_90, %c0_91, %c0_92] : memref<8x1x1xi32, #tpu.memory_space<vmem>>, vector<1x1x1xi32>
    %195 = vector.shape_cast %194 : vector<1x1x1xi32> to vector<1x1xi32>
    %196 = vector.shape_cast %193 : vector<1x1xi32> to vector<1x1x1xi32>
    tpu.vector_store %arg3[%c6_90, %c0_91, %c0_92], %196 {strides = array<i32>} : memref<8x1x1xi32, #tpu.memory_space<vmem>>, vector<1x1x1xi32>,
    %c0_i32_93 = arith.constant 0 : i32
    %197 = vector.broadcast %c0_i32_93 : i32 to vector<8x128xi32>
    %198 = arith.cmpi sgt, %51, %197 : vector<8x128xi32>
    %c1_i32_94 = arith.constant 1 : i32
    %199 = vector.broadcast %c1_i32_94 : i32 to vector<8x128xi32>
    %200 = arith.subi %51, %199 : vector<8x128xi32>
    %c1024_i32_95 = arith.constant 1024 : i32
    %201 = vector.broadcast %c1024_i32_95 : i32 to vector<8x128xi32>
    %202 = arith.muli %200, %201 : vector<8x128xi32>
    %203 = arith.addi %202, %56 : vector<8x128xi32>
    %c1024_i32_96 = arith.constant 1024 : i32
    %204 = vector.broadcast %c1024_i32_96 : i32 to vector<8x128xi32>
    %205 = arith.select %198, %203, %204 : vector<8x128xi1>, vector<8x128xi32>
    %cst_97 = arith.constant dense<2147483647> : vector<8xi32>
    %206 = vector.multi_reduction <minsi>, %205, %cst_97 [1] : vector<8x128xi32> to vector<8xi32>
    %207 = vector.shape_cast %206 : vector<8xi32> to vector<8x1xi32>
    %cst_98 = arith.constant dense<2147483647> : vector<1xi32>
    %208 = vector.multi_reduction <minsi>, %207, %cst_98 [0] : vector<8x1xi32> to vector<1xi32>
    %209 = vector.shape_cast %208 : vector<1xi32> to vector<1x1xi32>
    %c32_i32_99 = arith.constant 32 : i32
    %210 = vector.broadcast %c32_i32_99 : i32 to vector<1x1xi32>
    %211 = arith.cmpi sge, %209, %210 : vector<1x1xi32>
    %c0_i32_100 = arith.constant 0 : i32
    %212 = vector.broadcast %c0_i32_100 : i32 to vector<1x1xi32>
    %213 = arith.select %211, %212, %209 : vector<1x1xi1>, vector<1x1xi32>
    %c7_101 = arith.constant 7 : index
    %c0_102 = arith.constant 0 : index
    %c0_103 = arith.constant 0 : index
    %214 = vector.load %arg3[%c7_101, %c0_102, %c0_103] : memref<8x1x1xi32, #tpu.memory_space<vmem>>, vector<1x1x1xi32>
    %215 = vector.shape_cast %214 : vector<1x1x1xi32> to vector<1x1xi32>
    %216 = vector.shape_cast %213 : vector<1x1xi32> to vector<1x1x1xi32>
    tpu.vector_store %arg3[%c7_101, %c0_102, %c0_103], %216 {strides = array<i32>} : memref<8x1x1xi32, #tpu.memory_space<vmem>>, vector<1x1x1xi32>,
    return
  }
  func.func @transform_0(%arg0: i32) -> (i32, i32) {
    %c0_i32 = arith.constant 0 : i32
    %c0_i32_0 = arith.constant 0 : i32
    return %arg0, %c0_i32 : i32, i32
  }
  func.func @transform_1(%arg0: i32) -> (i32, i32, i32) {
    %c0_i32 = arith.constant 0 : i32
    %c0_i32_0 = arith.constant 0 : i32
    %c0_i32_1 = arith.constant 0 : i32
    %c0_i32_2 = arith.constant 0 : i32
    return %c0_i32, %c0_i32_0, %c0_i32_1 : i32, i32, i32
  }
  func.func @transform_2(%arg0: i32) -> (i32, i32, i32) {
    %c0_i32 = arith.constant 0 : i32
    %c0_i32_0 = arith.constant 0 : i32
    %c0_i32_1 = arith.constant 0 : i32
    return %arg0, %c0_i32, %c0_i32_0 : i32, i32, i32
  }
}

</mosaic_0001>

<llo_original>
// kernel: tpu_custom_call.1
$region0: #{tpu_custom_call.1}
  #allocation0 [shape = 'u32[]', space=smem, size = 0x4, offset = 0x4, fixed_abs, tag = 'smem constant byte address 0x4 - core index']
  #allocation1 [shape = 'u32[144,128]{1,0:T(1,128)}', space=vmem, size = 0x12000, scoped, tag = 'internal scratch']
  %s0 = inlined_call_operand.vmem [shape: s32[8,1], index: 0, kind: input, shape index: {}]
  %s1 = inlined_call_operand.vmem [shape: s32[1,8,128], index: 1, kind: input, shape index: {}]
  %s2 = inlined_call_operand.vmem [shape: s32[8,1,1], index: 2, kind: output, shape index: {}]
  %s3 = sld [smem:[#allocation0]]
  $region22: #{tpu_custom_call.1} parent=0
    _
  %s5 = ssub.s32 1, %s3
  %s6 = scalar_select 0, %s5, %s3
  $region1: #{tpu_custom_call.1} parent=0
    #allocation2 [shape = 'u8[4096]{0}', space=smem, size = 0x1000, scoped, tag = 'input window, operand 0, single buffered']
    #allocation3 [shape = 's32[1]{0}', space=sflag, size = 0x4, scoped, tag = 'scoped memory for tpu_custom_call.1']
    %7 = vsyncpa [#allocation3], 0
    // Predicated region
    $region2: #{tpu_custom_call.1} parent=1 // pred_check
      _
    $region3: #{tpu_custom_call.1} parent=1 // pred_check_branch
      %9 = sbr.rel (0) target = $region5
    $region4: #{tpu_custom_call.1} parent=1 // pred_region
      %s11 = ssub.s32 128, 128
      %12 = vsyncadd [#allocation3], %s11
      %s14 = sshll.u32 %s0, 4
      %s15 = int_to_ptr.vmem [resolvable:$true] %s14
      %17 = dma.vmem_to_smem %s15, 128, [#allocation2], [#allocation3]
    $region5: #{tpu_custom_call.1} parent=1 // pred_fallthru
      _
    // Predicated region
    $region6: #{tpu_custom_call.1} parent=1 // pred_check
      _
    $region7: #{tpu_custom_call.1} parent=1 // pred_check_branch
      %19 = sbr.rel (0) target = $region9
    $region8: #{tpu_custom_call.1} parent=1 // pred_region
      _
    $region9: #{tpu_custom_call.1} parent=1 // pred_fallthru
      _
    // Predicated region
    $region10: #{tpu_custom_call.1} parent=1 // pred_check
      _
    $region11: #{tpu_custom_call.1} parent=1 // pred_check_branch
      %21 = sbr.rel (0) target = $region13
    $region12: #{tpu_custom_call.1} parent=1 // pred_region
      %22 = dma.done [#allocation3], 128
    $region13: #{tpu_custom_call.1} parent=1 // pred_fallthru
      _
    %23 = sfence
    %s24 = sld [smem:[#allocation2]]
    %s25 = sld [smem:[#allocation2 + $0x80]]
    %s26 = sld [smem:[#allocation2 + $0x100]]
    %s27 = sld [smem:[#allocation2 + $0x180]]
    %s28 = sld [smem:[#allocation2 + $0x200]]
    %s29 = sld [smem:[#allocation2 + $0x280]]
    %s30 = sld [smem:[#allocation2 + $0x300]]
    %s31 = sld [smem:[#allocation2 + $0x380]]
    %v32 = vld [vmem:[%s1] sm:$0xff]
    %v33 = vstv %s24
    %vm34 = vcmp.eq.s32.totalorder %v32, %v33
    %v35 = vsel %vm34, 1, 0
    %v36 = vstv %s25
    %vm37 = vcmp.eq.s32.totalorder %v32, %v36
    %v38 = vsel %vm37, 1, 0
    %v39 = vstv %s26
    %vm40 = vcmp.eq.s32.totalorder %v32, %v39
    %v41 = vsel %vm40, 1, 0
    %v42 = vstv %s27
    %vm43 = vcmp.eq.s32.totalorder %v32, %v42
    %v44 = vsel %vm43, 1, 0
    %v45 = vstv %s28
    %vm46 = vcmp.eq.s32.totalorder %v32, %v45
    %v47 = vsel %vm46, 1, 0
    %v48 = vstv %s29
    %vm49 = vcmp.eq.s32.totalorder %v32, %v48
    %v50 = vsel %vm49, 1, 0
    %v51 = vstv %s30
    %vm52 = vcmp.eq.s32.totalorder %v32, %v51
    %v53 = vsel %vm52, 1, 0
    %v54 = vstv %s31
    %vm55 = vcmp.eq.s32.totalorder %v32, %v54
    %v56 = vsel %vm55, 1, 0
    %v57 = vlaneseq
    %v58 = vshrl.u32 %v57, 7
    %v59 = vmul.u32 %v58, 128
    %v60 = vlaneseq
    %v61 = vand.u32 %v60, 127
    %v62 = vadd.s32 %v59, %v61
    %vm63 = vcmp.gt.s32.totalorder %v35, 0
    %v64 = vsub.s32 %v35, 1
    %v65 = vmul.u32 %v64, 1024
    %v66 = vadd.s32 %v65, %v62
    %v67 = vsel %vm63, %v66, 1024
    %v68 = vand.u32 %v67, 65535
    %v69 = vshra.s32 %v67, 16
    %v70 = vcvt.s32.f32 %v68
    %v71 = vcvt.s32.f32 %v69
    %72 = vmin.xlane.f32.xlu0 %v71
    %v73 = vpop.xlane.xlu0 %72
    %vm74 = vcmp.eq.f32.partialorder %v71, %v73
    %v75 = vsel %vm74, %v70, inf
    %76 = vmin.xlane.f32.xlu0 %v75
    %v77 = vpop.xlane.xlu0 %76
    %v78 = vcvt.f32.s32 %v77
    %v79 = vcvt.f32.s32 %v73
    %v80 = vshll.u32 %v79, 16
    %v81 = vadd.s32 %v80, %v78
    %v82 = vrot.slane %v81, 4
    %vm83 = vcmp.lt.s32.totalorder %v81, %v82
    %v84 = vsel %vm83, %v81, %v82
    %v85 = vrot.slane %v84, 2
    %vm86 = vcmp.lt.s32.totalorder %v84, %v85
    %v87 = vsel %vm86, %v84, %v85
    %v88 = vrot.slane %v87, 1
    %vm89 = vcmp.lt.s32.totalorder %v87, %v88
    %v90 = vsel %vm89, %v87, %v88
    %vm91 = vcmp.ge.s32.totalorder %v90, 32
    %v92 = vsel %vm91, 0, %v90
    %vm93 = vcmask 0
    %94 = vst.msk [vmem:[%s2] sm:$0x1] %vm93, %v92
    %vm95 = vcmp.gt.s32.totalorder %v38, 0
    %v96 = vsub.s32 %v38, 1
    %v97 = vmul.u32 %v96, 1024
    %v98 = vadd.s32 %v97, %v62
    %v99 = vsel %vm95, %v98, 1024
    %v100 = vand.u32 %v99, 65535
    %v101 = vshra.s32 %v99, 16
    %v102 = vcvt.s32.f32 %v100
    %v103 = vcvt.s32.f32 %v101
    %104 = vmin.xlane.f32.xlu0 %v103
    %v105 = vpop.xlane.xlu0 %104
    %vm106 = vcmp.eq.f32.partialorder %v103, %v105
    %v107 = vsel %vm106, %v102, inf
    %108 = vmin.xlane.f32.xlu0 %v107
    %v109 = vpop.xlane.xlu0 %108
    %v110 = vcvt.f32.s32 %v109
    %v111 = vcvt.f32.s32 %v105
    %v112 = vshll.u32 %v111, 16
    %v113 = vadd.s32 %v112, %v110
    %v114 = vrot.slane %v113, 4
    %vm115 = vcmp.lt.s32.totalorder %v113, %v114
    %v116 = vsel %vm115, %v113, %v114
    %v117 = vrot.slane %v116, 2
    %vm118 = vcmp.lt.s32.totalorder %v116, %v117
    %v119 = vsel %vm118, %v116, %v117
    %v120 = vrot.slane %v119, 1
    %vm121 = vcmp.lt.s32.totalorder %v119, %v120
    %v122 = vsel %vm121, %v119, %v120
    %vm123 = vcmp.ge.s32.totalorder %v122, 32
    %v124 = vsel %vm123, 0, %v122
    %s125 = scalar_lea.vmem %s2, 1
    %126 = vst.msk [vmem:[%s125] sm:$0x1] %vm93, %v124
    %vm127 = vcmp.gt.s32.totalorder %v41, 0
    %v128 = vsub.s32 %v41, 1
    %v129 = vmul.u32 %v128, 1024
    %v130 = vadd.s32 %v129, %v62
    %v131 = vsel %vm127, %v130, 1024
    %v132 = vand.u32 %v131, 65535
    %v133 = vshra.s32 %v131, 16
    %v134 = vcvt.s32.f32 %v132
    %v135 = vcvt.s32.f32 %v133
    %136 = vmin.xlane.f32.xlu0 %v135
    %v137 = vpop.xlane.xlu0 %136
    %vm138 = vcmp.eq.f32.partialorder %v135, %v137
    %v139 = vsel %vm138, %v134, inf
    %140 = vmin.xlane.f32.xlu0 %v139
    %v141 = vpop.xlane.xlu0 %140
    %v142 = vcvt.f32.s32 %v141
    %v143 = vcvt.f32.s32 %v137
    %v144 = vshll.u32 %v143, 16
    %v145 = vadd.s32 %v144, %v142
    %v146 = vrot.slane %v145, 4
    %vm147 = vcmp.lt.s32.totalorder %v145, %v146
    %v148 = vsel %vm147, %v145, %v146
    %v149 = vrot.slane %v148, 2
    %vm150 = vcmp.lt.s32.totalorder %v148, %v149
    %v151 = vsel %vm150, %v148, %v149
    %v152 = vrot.slane %v151, 1
    %vm153 = vcmp.lt.s32.totalorder %v151, %v152
    %v154 = vsel %vm153, %v151, %v152
    %vm155 = vcmp.ge.s32.totalorder %v154, 32
    %v156 = vsel %vm155, 0, %v154
    %s157 = scalar_lea.vmem %s2, 2
    %158 = vst.msk [vmem:[%s157] sm:$0x1] %vm93, %v156
    %vm159 = vcmp.gt.s32.totalorder %v44, 0
    %v160 = vsub.s32 %v44, 1
    %v161 = vmul.u32 %v160, 1024
    %v162 = vadd.s32 %v161, %v62
    %v163 = vsel %vm159, %v162, 1024
    %v164 = vand.u32 %v163, 65535
    %v165 = vshra.s32 %v163, 16
    %v166 = vcvt.s32.f32 %v164
    %v167 = vcvt.s32.f32 %v165
    %168 = vmin.xlane.f32.xlu0 %v167
    %v169 = vpop.xlane.xlu0 %168
    %vm170 = vcmp.eq.f32.partialorder %v167, %v169
    %v171 = vsel %vm170, %v166, inf
    %172 = vmin.xlane.f32.xlu0 %v171
    %v173 = vpop.xlane.xlu0 %172
    %v174 = vcvt.f32.s32 %v173
    %v175 = vcvt.f32.s32 %v169
    %v176 = vshll.u32 %v175, 16
    %v177 = vadd.s32 %v176, %v174
    %v178 = vrot.slane %v177, 4
    %vm179 = vcmp.lt.s32.totalorder %v177, %v178
    %v180 = vsel %vm179, %v177, %v178
    %v181 = vrot.slane %v180, 2
    %vm182 = vcmp.lt.s32.totalorder %v180, %v181
    %v183 = vsel %vm182, %v180, %v181
    %v184 = vrot.slane %v183, 1
    %vm185 = vcmp.lt.s32.totalorder %v183, %v184
    %v186 = vsel %vm185, %v183, %v184
    %vm187 = vcmp.ge.s32.totalorder %v186, 32
    %v188 = vsel %vm187, 0, %v186
    %s189 = scalar_lea.vmem %s2, 3
    %190 = vst.msk [vmem:[%s189] sm:$0x1] %vm93, %v188
    %vm191 = vcmp.gt.s32.totalorder %v47, 0
    %v192 = vsub.s32 %v47, 1
    %v193 = vmul.u32 %v192, 1024
    %v194 = vadd.s32 %v193, %v62
    %v195 = vsel %vm191, %v194, 1024
    %v196 = vand.u32 %v195, 65535
    %v197 = vshra.s32 %v195, 16
    %v198 = vcvt.s32.f32 %v196
    %v199 = vcvt.s32.f32 %v197
    %200 = vmin.xlane.f32.xlu0 %v199
    %v201 = vpop.xlane.xlu0 %200
    %vm202 = vcmp.eq.f32.partialorder %v199, %v201
    %v203 = vsel %vm202, %v198, inf
    %204 = vmin.xlane.f32.xlu0 %v203
    %v205 = vpop.xlane.xlu0 %204
    %v206 = vcvt.f32.s32 %v205
    %v207 = vcvt.f32.s32 %v201
    %v208 = vshll.u32 %v207, 16
    %v209 = vadd.s32 %v208, %v206
    %v210 = vrot.slane %v209, 4
    %vm211 = vcmp.lt.s32.totalorder %v209, %v210
    %v212 = vsel %vm211, %v209, %v210
    %v213 = vrot.slane %v212, 2
    %vm214 = vcmp.lt.s32.totalorder %v212, %v213
    %v215 = vsel %vm214, %v212, %v213
    %v216 = vrot.slane %v215, 1
    %vm217 = vcmp.lt.s32.totalorder %v215, %v216
    %v218 = vsel %vm217, %v215, %v216
    %vm219 = vcmp.ge.s32.totalorder %v218, 32
    %v220 = vsel %vm219, 0, %v218
    %s221 = scalar_lea.vmem %s2, 4
    %222 = vst.msk [vmem:[%s221] sm:$0x1] %vm93, %v220
    %vm223 = vcmp.gt.s32.totalorder %v50, 0
    %v224 = vsub.s32 %v50, 1
    %v225 = vmul.u32 %v224, 1024
    %v226 = vadd.s32 %v225, %v62
    %v227 = vsel %vm223, %v226, 1024
    %v228 = vand.u32 %v227, 65535
    %v229 = vshra.s32 %v227, 16
    %v230 = vcvt.s32.f32 %v228
    %v231 = vcvt.s32.f32 %v229
    %232 = vmin.xlane.f32.xlu0 %v231
    %v233 = vpop.xlane.xlu0 %232
    %vm234 = vcmp.eq.f32.partialorder %v231, %v233
    %v235 = vsel %vm234, %v230, inf
    %236 = vmin.xlane.f32.xlu0 %v235
    %v237 = vpop.xlane.xlu0 %236
    %v238 = vcvt.f32.s32 %v237
    %v239 = vcvt.f32.s32 %v233
    %v240 = vshll.u32 %v239, 16
    %v241 = vadd.s32 %v240, %v238
    %v242 = vrot.slane %v241, 4
    %vm243 = vcmp.lt.s32.totalorder %v241, %v242
    %v244 = vsel %vm243, %v241, %v242
    %v245 = vrot.slane %v244, 2
    %vm246 = vcmp.lt.s32.totalorder %v244, %v245
    %v247 = vsel %vm246, %v244, %v245
    %v248 = vrot.slane %v247, 1
    %vm249 = vcmp.lt.s32.totalorder %v247, %v248
    %v250 = vsel %vm249, %v247, %v248
    %vm251 = vcmp.ge.s32.totalorder %v250, 32
    %v252 = vsel %vm251, 0, %v250
    %s253 = scalar_lea.vmem %s2, 5
    %254 = vst.msk [vmem:[%s253] sm:$0x1] %vm93, %v252
    %vm255 = vcmp.gt.s32.totalorder %v53, 0
    %v256 = vsub.s32 %v53, 1
    %v257 = vmul.u32 %v256, 1024
    %v258 = vadd.s32 %v257, %v62
    %v259 = vsel %vm255, %v258, 1024
    %v260 = vand.u32 %v259, 65535
    %v261 = vshra.s32 %v259, 16
    %v262 = vcvt.s32.f32 %v260
    %v263 = vcvt.s32.f32 %v261
    %264 = vmin.xlane.f32.xlu0 %v263
    %v265 = vpop.xlane.xlu0 %264
    %vm266 = vcmp.eq.f32.partialorder %v263, %v265
    %v267 = vsel %vm266, %v262, inf
    %268 = vmin.xlane.f32.xlu0 %v267
    %v269 = vpop.xlane.xlu0 %268
    %v270 = vcvt.f32.s32 %v269
    %v271 = vcvt.f32.s32 %v265
    %v272 = vshll.u32 %v271, 16
    %v273 = vadd.s32 %v272, %v270
    %v274 = vrot.slane %v273, 4
    %vm275 = vcmp.lt.s32.totalorder %v273, %v274
    %v276 = vsel %vm275, %v273, %v274
    %v277 = vrot.slane %v276, 2
    %vm278 = vcmp.lt.s32.totalorder %v276, %v277
    %v279 = vsel %vm278, %v276, %v277
    %v280 = vrot.slane %v279, 1
    %vm281 = vcmp.lt.s32.totalorder %v279, %v280
    %v282 = vsel %vm281, %v279, %v280
    %vm283 = vcmp.ge.s32.totalorder %v282, 32
    %v284 = vsel %vm283, 0, %v282
    %s285 = scalar_lea.vmem %s2, 6
    %286 = vst.msk [vmem:[%s285] sm:$0x1] %vm93, %v284
    %vm287 = vcmp.gt.s32.totalorder %v56, 0
    %v288 = vsub.s32 %v56, 1
    %v289 = vmul.u32 %v288, 1024
    %v290 = vadd.s32 %v289, %v62
    %v291 = vsel %vm287, %v290, 1024
    %v292 = vand.u32 %v291, 65535
    %v293 = vshra.s32 %v291, 16
    %v294 = vcvt.s32.f32 %v292
    %v295 = vcvt.s32.f32 %v293
    %296 = vmin.xlane.f32.xlu0 %v295
    %v297 = vpop.xlane.xlu0 %296
    %vm298 = vcmp.eq.f32.partialorder %v295, %v297
    %v299 = vsel %vm298, %v294, inf
    %300 = vmin.xlane.f32.xlu0 %v299
    %v301 = vpop.xlane.xlu0 %300
    %v302 = vcvt.f32.s32 %v301
    %v303 = vcvt.f32.s32 %v297
    %v304 = vshll.u32 %v303, 16
    %v305 = vadd.s32 %v304, %v302
    %v306 = vrot.slane %v305, 4
    %vm307 = vcmp.lt.s32.totalorder %v305, %v306
    %v308 = vsel %vm307, %v305, %v306
    %v309 = vrot.slane %v308, 2
    %vm310 = vcmp.lt.s32.totalorder %v308, %v309
    %v311 = vsel %vm310, %v308, %v309
    %v312 = vrot.slane %v311, 1
    %vm313 = vcmp.lt.s32.totalorder %v311, %v312
    %v314 = vsel %vm313, %v311, %v312
    %vm315 = vcmp.ge.s32.totalorder %v314, 32
    %v316 = vsel %vm315, 0, %v314
    %s317 = scalar_lea.vmem %s2, 7
    %318 = vst.msk [vmem:[%s317] sm:$0x1] %vm93, %v316
    // Predicated region
    $region14: #{tpu_custom_call.1} parent=1 // pred_check
      _
    $region15: #{tpu_custom_call.1} parent=1 // pred_check_branch
      %320 = sbr.rel (0) target = $region17
    $region16: #{tpu_custom_call.1} parent=1 // pred_region
      _
    $region17: #{tpu_custom_call.1} parent=1 // pred_fallthru
      _
    // Predicated region
    $region18: #{tpu_custom_call.1} parent=1 // pred_check
      _
    $region19: #{tpu_custom_call.1} parent=1 // pred_check_branch
      %322 = sbr.rel (0) target = $region21
    $region20: #{tpu_custom_call.1} parent=1 // pred_region
      _
    $region21: #{tpu_custom_call.1} parent=1 // pred_fallthru
      _
    %323 = vsyncpa [#allocation3], 1

</llo_original>
